<compile_context>
chip_gen: v6e
topology: v6e:2x2x1
jax: 0.10.0
libtpu: 0.0.40
codegen_flags: <defaults>
</compile_context>

<pallas_src>
import jax
import jax.numpy as jnp
import numpy as np
from jax.experimental import pallas as pl
from jax.experimental.pallas import tpu as pltpu


def _make_colla_kernel(num_agents, d_model, height, width, batch_block):
    A, C, H, W, Bt = num_agents, d_model, height, width, batch_block
    HW = H * W

    def kernel(*refs):
        agent_refs = refs[:A]          # A x (Bt, C, HW) VMEM feature blocks
        w_ref = refs[A]                # (54,) SMEM: Conv3d weight (1,2,3,3,3) flat
        b_ref = refs[A + 1]            # (1,)  SMEM: Conv3d bias
        out_ref = refs[A + 2]          # (Bt, C, HW) VMEM

        # ---- load each agent block once; agent 0 doubles as the residual ----
        feats = [r[...] for r in agent_refs]
        x0 = feats[0]

        # ---- max / sum over agents (pure VPU on lane-dense tiles) ------------
        # The mean is never materialized: 1/A is folded into the ic=1 conv
        # weights below, so the sum plane is used directly.
        fmax = feats[0]
        fsum = feats[0]
        for t in range(1, A):
            fmax = jnp.maximum(fmax, feats[t])
            fsum = fsum + feats[t]
        inv_a = 1.0 / A

        # ---- hoist conv parameters out of the tap loops (single SMEM reads) --
        ws = [w_ref[i] for i in range(2 * 3 * 3 * 3)]
        bias = b_ref[0]

        def widx(ic, dc, dh, dw):
            # PyTorch Conv3d weight (1, 2, 3, 3, 3) flattened row-major.
            return ((ic * 3 + (dc + 1)) * 3 + (dh + 1)) * 3 + (dw + 1)

        # effective scalar weight: ic=0 pairs with fmax, ic=1 pairs with fsum/A
        def weff(ic, dc, dh, dw):
            w = ws[widx(ic, dc, dh, dw)]
            return w * inv_a if ic == 1 else w

        # ---- 6 depth-shifted planes: plane[(ic,dc)][b,c,f] = base_ic[b,c+dc,f]
        zero_row = jnp.zeros((Bt, 1, HW), jnp.float32)

        def depth_tap(x, dc):
            if dc == 0:
                return x
            if C == 1:
                return jnp.zeros_like(x)
            if dc == 1:                # read c+1, zero at c = C-1
                return jnp.concatenate([x[:, 1:, :], zero_row], axis=1)
            # dc == -1: read c-1, zero at c = 0
            return jnp.concatenate([zero_row, x[:, :C - 1, :]], axis=1)

        planes = {}
        for ic, base in enumerate((fmax, fsum)):
            for dc in (-1, 0, 1):
                planes[(ic, dc)] = depth_tap(base, dc)

        # ---- spatial-shift machinery on the flattened H*W lane axis ----------
        pos = jax.lax.broadcasted_iota(jnp.int32, (Bt, C, HW), 2)
        if (W & (W - 1)) == 0:
            col = pos & (W - 1)        # W power of two (demo case): cheap bit op
        else:
            col = pos % W              # general fallback

        # Elementary boundary predicates, computed once and reused by all taps.
        row_ok = {0: None,
                  1: pos < (H - 1) * W,     # reading h+1 valid iff h <= H-2
                  -1: pos >= W}             # reading h-1 valid iff h >= 1
        col_ok = {0: None,
                  1: col < (W - 1),         # reading w+1 valid iff w <= W-2
                  -1: col >= 1}             # reading w-1 valid iff w >= 1

        def spatial_shift(x, dh, dw):
            # y[b, c, h*W + w] = x[b, c, (h+dh)*W + (w+dw)], zero where OOB.
            delta = dh * W + dw
            if delta != 0:
                # static lane rotation: y[f] = x[(f + delta) mod HW]
                y = jnp.concatenate([x[..., delta:], x[..., :delta]], axis=-1)
            else:
                y = x
            mask = None
            for m in (row_ok[dh], col_ok[dw]):
                if m is not None:
                    mask = m if mask is None else (mask & m)
            if mask is not None:
                y = jnp.where(mask, y, 0.0)
            return y

        # ---- 3x3x3 conv: per (dh,dw), fold the 6 (ic,dc) taps with scalar FMAs
        #      then add one masked lane-shift of the combined plane. -----------
        acc = jnp.full((Bt, C, HW), bias, jnp.float32)
        for dh in (-1, 0, 1):
            for dw in (-1, 0, 1):
                t = None
                for ic in range(2):
                    for dc in (-1, 0, 1):
                        term = weff(ic, dc, dh, dw) * planes[(ic, dc)]
                        t = term if t is None else t + term
                acc = acc + spatial_shift(t, dh, dw)

        # ReLU then residual add of the agent-0 (spatialAttn) feature.
        out_ref[...] = jnp.maximum(acc, 0.0) + x0

    return kernel


def _pick_batch_block(batch, num_agents, d_model, hw, budget_bytes=8 * 1024 * 1024):
    # Rough VMEM budget per grid step: (A inputs + 1 output) double-buffered by
    # the pipeline plus ~16 block-sized in-kernel temporaries (fmax/fsum/planes/
    # acc/masks). Conservative enough for v7x's smaller scoped VMEM.
    per_batch = ((num_agents + 1) * 2 + 16) * d_model * hw * 4
    bt = max(1, min(batch, budget_bytes // max(per_batch, 1)))
    while batch % bt:
        bt -= 1
    return bt


def colla_fea_aggregate(feature_dict_list, scale, conv3d_w, conv3d_b, *,
                        num_agents, size, batch_block=None):
    """Pallas implementation of CollaFeaAggregate.forward."""
    H, W = size
    HW = H * W
    x0 = feature_dict_list[0][f'spatialAttn_result_{scale}x']        # (B, L, C)
    B, L, C = x0.shape
    assert L == HW

    # (B, L, C) -> (B, C, HW): one tiny XLA transpose per agent. No stack, no
    # pad -- the kernel consumes the A agent arrays directly and builds the
    # conv halo implicitly via masked shifts.
    agents = [jnp.transpose(x0, (0, 2, 1)).astype(jnp.float32)]
    for t in range(1, num_agents):
        xt = feature_dict_list[t][f'temporalAttn_result_{scale}x']   # (B, L, C)
        agents.append(jnp.transpose(xt, (0, 2, 1)).astype(jnp.float32))

    if batch_block is None:
        bt = _pick_batch_block(B, num_agents, C, HW)
    else:
        bt = int(batch_block)
        assert B % bt == 0, (B, bt)
    grid = (B // bt,)

    kernel = _make_colla_kernel(num_agents, C, H, W, bt)
    feat_spec = pl.BlockSpec((bt, C, HW), lambda i: (i, 0, 0))

    out = pl.pallas_call(
        kernel,
        out_shape=jax.ShapeDtypeStruct((B, C, HW), jnp.float32),
        grid=grid,
        in_specs=[feat_spec] * num_agents + [
            pl.BlockSpec(memory_space=pltpu.MemorySpace.SMEM),   # conv3d weight
            pl.BlockSpec(memory_space=pltpu.MemorySpace.SMEM),   # conv3d bias
        ],
        out_specs=pl.BlockSpec((bt, C, HW), lambda i: (i, 0, 0)),
        compiler_params=pltpu.CompilerParams(
            dimension_semantics=("parallel",)),   # batch axis -> both TCs on v7x
    )(*agents,
      conv3d_w.reshape(-1).astype(jnp.float32),
      conv3d_b.astype(jnp.float32))

    # (B, C, HW) -> (B, H*W, C): single small XLA transpose; keeping the kernel
    # output channel-major keeps its stores lane-dense (C = d_model may be <128).
    return jnp.transpose(out, (0, 2, 1))


def reference_forward(feature_dict_list, scale, conv3d_w, conv3d_b, *,
                      num_agents, size):
    """Pure-JAX reference of the PyTorch forward (for verification)."""
    H, W = size
    x0 = feature_dict_list[0][f'spatialAttn_result_{scale}x']
    B, L, C = x0.shape
    feats = [jnp.transpose(x0, (0, 2, 1)).reshape(B, C, H, W)]
    for t in range(1, num_agents):
        xt = feature_dict_list[t][f'temporalAttn_result_{scale}x']
        feats.append(jnp.transpose(xt, (0, 2, 1)).reshape(B, C, H, W))
    stacked = jnp.stack(feats, axis=1)                               # (B, A, C, H, W)
    fmax = jnp.max(stacked, axis=1)
    fmean = jnp.mean(stacked, axis=1)
    fused = jnp.stack([fmax, fmean], axis=1)                         # (B, 2, C, H, W)
    conv = jax.lax.conv_general_dilated(
        fused, conv3d_w, window_strides=(1, 1, 1),
        padding=((1, 1), (1, 1), (1, 1)),
        dimension_numbers=('NCDHW', 'OIDHW', 'NCDHW')) + conv3d_b[0]
    out = jnp.maximum(conv[:, 0], 0.0) + stacked[:, 0]
    return out.reshape(B, C, H * W).transpose(0, 2, 1)


if __name__ == "__main__":
    d_model, num_agents, size = 8, 3, (8, 16)
    H, W = size
    B, L = 4, H * W
    scale = 2

    key = jax.random.PRNGKey(0)
    keys = jax.random.split(key, num_agents + 2)

    feature_dict_list = [{
        f'spatialAttn_result_{scale}x':
            jax.random.normal(keys[0], (B, L, d_model), jnp.float32)
    }]
    for t in range(1, num_agents):
        feature_dict_list.append({
            f'temporalAttn_result_{scale}x':
                jax.random.normal(keys[t], (B, L, d_model), jnp.float32)
        })

    # Deterministic synthetic Conv3d(2, 1, 3) parameters (PyTorch-like uniform init).
    fan_in = 2 * 3 * 3 * 3
    bound = 1.0 / np.sqrt(fan_in)
    conv3d_w = jax.random.uniform(keys[num_agents], (1, 2, 3, 3, 3),
                                  jnp.float32, -bound, bound)
    conv3d_b = jax.random.uniform(keys[num_agents + 1], (1,),
                                  jnp.float32, -bound, bound)

    ref = reference_forward(feature_dict_list, scale, conv3d_w, conv3d_b,
                            num_agents=num_agents, size=size)

    # Auto batch blocking (tiny problem -> whole batch in one grid step) ...
    out_auto = jax.block_until_ready(
        colla_fea_aggregate(feature_dict_list, scale, conv3d_w, conv3d_b,
                            num_agents=num_agents, size=size))
    # ... plus an explicitly blocked variant that exercises grid > 1 pipelining.
    out_blocked = jax.block_until_ready(
        colla_fea_aggregate(feature_dict_list, scale, conv3d_w, conv3d_b,
                            num_agents=num_agents, size=size, batch_block=2))

    for out in (out_auto, out_blocked):
        assert out.shape == (B, L, d_model), out.shape
        err = float(jnp.max(jnp.abs(out - ref)))
        assert err < 1e-4, f"max abs error vs reference: {err}"
    print("KERNEL_OK")
</pallas_src>

<mosaic_0001>
module attributes {stable_mosaic.version = 11 : i64} {
  func.func @kernel(%arg0: i32, %arg1: memref<4x8x128xf32, #tpu.memory_space<vmem>>, %arg2: memref<4x8x128xf32, #tpu.memory_space<vmem>>, %arg3: memref<4x8x128xf32, #tpu.memory_space<vmem>>, %arg4: memref<54xf32, #tpu.memory_space<smem>>, %arg5: memref<1xf32, #tpu.memory_space<smem>>, %arg6: memref<4x8x128xf32, #tpu.memory_space<vmem>>) attributes {dimension_semantics = [#tpu.dimension_semantics<parallel>], iteration_bounds = array<i64: 1>, scalar_prefetch = 0 : i64, scratch_operands = 0 : i64, tpu.core_type = #tpu.core_type<tc>, window_params = [{transform_indices = @transform_0, window_bounds = array<i64: 4, 8, 128>}, {transform_indices = @transform_1, window_bounds = array<i64: 4, 8, 128>}, {transform_indices = @transform_2, window_bounds = array<i64: 4, 8, 128>}, {transform_indices = @transform_3, window_bounds = array<i64: 54>}, {transform_indices = @transform_4, window_bounds = array<i64: 1>}, {transform_indices = @transform_5, window_bounds = array<i64: 4, 8, 128>}]} {
    %c0 = arith.constant 0 : index
    %c0_0 = arith.constant 0 : index
    %c0_1 = arith.constant 0 : index
    %0 = vector.load %arg1[%c0, %c0_0, %c0_1] : memref<4x8x128xf32, #tpu.memory_space<vmem>>, vector<4x8x128xf32>
    %c0_2 = arith.constant 0 : index
    %c0_3 = arith.constant 0 : index
    %c0_4 = arith.constant 0 : index
    %1 = vector.load %arg2[%c0_2, %c0_3, %c0_4] : memref<4x8x128xf32, #tpu.memory_space<vmem>>, vector<4x8x128xf32>
    %c0_5 = arith.constant 0 : index
    %c0_6 = arith.constant 0 : index
    %c0_7 = arith.constant 0 : index
    %2 = vector.load %arg3[%c0_5, %c0_6, %c0_7] : memref<4x8x128xf32, #tpu.memory_space<vmem>>, vector<4x8x128xf32>
    %3 = arith.maximumf %0, %1 : vector<4x8x128xf32>
    %4 = arith.addf %0, %1 : vector<4x8x128xf32>
    %5 = arith.maximumf %3, %2 : vector<4x8x128xf32>
    %6 = arith.addf %4, %2 : vector<4x8x128xf32>
    %c0_8 = arith.constant 0 : index
    %7 = memref.load %arg4[%c0_8] : memref<54xf32, #tpu.memory_space<smem>>
    %c1 = arith.constant 1 : index
    %8 = memref.load %arg4[%c1] : memref<54xf32, #tpu.memory_space<smem>>
    %c2 = arith.constant 2 : index
    %9 = memref.load %arg4[%c2] : memref<54xf32, #tpu.memory_space<smem>>
    %c3 = arith.constant 3 : index
    %10 = memref.load %arg4[%c3] : memref<54xf32, #tpu.memory_space<smem>>
    %c4 = arith.constant 4 : index
    %11 = memref.load %arg4[%c4] : memref<54xf32, #tpu.memory_space<smem>>
    %c5 = arith.constant 5 : index
    %12 = memref.load %arg4[%c5] : memref<54xf32, #tpu.memory_space<smem>>
    %c6 = arith.constant 6 : index
    %13 = memref.load %arg4[%c6] : memref<54xf32, #tpu.memory_space<smem>>
    %c7 = arith.constant 7 : index
    %14 = memref.load %arg4[%c7] : memref<54xf32, #tpu.memory_space<smem>>
    %c8 = arith.constant 8 : index
    %15 = memref.load %arg4[%c8] : memref<54xf32, #tpu.memory_space<smem>>
    %c9 = arith.constant 9 : index
    %16 = memref.load %arg4[%c9] : memref<54xf32, #tpu.memory_space<smem>>
    %c10 = arith.constant 10 : index
    %17 = memref.load %arg4[%c10] : memref<54xf32, #tpu.memory_space<smem>>
    %c11 = arith.constant 11 : index
    %18 = memref.load %arg4[%c11] : memref<54xf32, #tpu.memory_space<smem>>
    %c12 = arith.constant 12 : index
    %19 = memref.load %arg4[%c12] : memref<54xf32, #tpu.memory_space<smem>>
    %c13 = arith.constant 13 : index
    %20 = memref.load %arg4[%c13] : memref<54xf32, #tpu.memory_space<smem>>
    %c14 = arith.constant 14 : index
    %21 = memref.load %arg4[%c14] : memref<54xf32, #tpu.memory_space<smem>>
    %c15 = arith.constant 15 : index
    %22 = memref.load %arg4[%c15] : memref<54xf32, #tpu.memory_space<smem>>
    %c16 = arith.constant 16 : index
    %23 = memref.load %arg4[%c16] : memref<54xf32, #tpu.memory_space<smem>>
    %c17 = arith.constant 17 : index
    %24 = memref.load %arg4[%c17] : memref<54xf32, #tpu.memory_space<smem>>
    %c18 = arith.constant 18 : index
    %25 = memref.load %arg4[%c18] : memref<54xf32, #tpu.memory_space<smem>>
    %c19 = arith.constant 19 : index
    %26 = memref.load %arg4[%c19] : memref<54xf32, #tpu.memory_space<smem>>
    %c20 = arith.constant 20 : index
    %27 = memref.load %arg4[%c20] : memref<54xf32, #tpu.memory_space<smem>>
    %c21 = arith.constant 21 : index
    %28 = memref.load %arg4[%c21] : memref<54xf32, #tpu.memory_space<smem>>
    %c22 = arith.constant 22 : index
    %29 = memref.load %arg4[%c22] : memref<54xf32, #tpu.memory_space<smem>>
    %c23 = arith.constant 23 : index
    %30 = memref.load %arg4[%c23] : memref<54xf32, #tpu.memory_space<smem>>
    %c24 = arith.constant 24 : index
    %31 = memref.load %arg4[%c24] : memref<54xf32, #tpu.memory_space<smem>>
    %c25 = arith.constant 25 : index
    %32 = memref.load %arg4[%c25] : memref<54xf32, #tpu.memory_space<smem>>
    %c26 = arith.constant 26 : index
    %33 = memref.load %arg4[%c26] : memref<54xf32, #tpu.memory_space<smem>>
    %c27 = arith.constant 27 : index
    %34 = memref.load %arg4[%c27] : memref<54xf32, #tpu.memory_space<smem>>
    %c28 = arith.constant 28 : index
    %35 = memref.load %arg4[%c28] : memref<54xf32, #tpu.memory_space<smem>>
    %c29 = arith.constant 29 : index
    %36 = memref.load %arg4[%c29] : memref<54xf32, #tpu.memory_space<smem>>
    %c30 = arith.constant 30 : index
    %37 = memref.load %arg4[%c30] : memref<54xf32, #tpu.memory_space<smem>>
    %c31 = arith.constant 31 : index
    %38 = memref.load %arg4[%c31] : memref<54xf32, #tpu.memory_space<smem>>
    %c32 = arith.constant 32 : index
    %39 = memref.load %arg4[%c32] : memref<54xf32, #tpu.memory_space<smem>>
    %c33 = arith.constant 33 : index
    %40 = memref.load %arg4[%c33] : memref<54xf32, #tpu.memory_space<smem>>
    %c34 = arith.constant 34 : index
    %41 = memref.load %arg4[%c34] : memref<54xf32, #tpu.memory_space<smem>>
    %c35 = arith.constant 35 : index
    %42 = memref.load %arg4[%c35] : memref<54xf32, #tpu.memory_space<smem>>
    %c36 = arith.constant 36 : index
    %43 = memref.load %arg4[%c36] : memref<54xf32, #tpu.memory_space<smem>>
    %c37 = arith.constant 37 : index
    %44 = memref.load %arg4[%c37] : memref<54xf32, #tpu.memory_space<smem>>
    %c38 = arith.constant 38 : index
    %45 = memref.load %arg4[%c38] : memref<54xf32, #tpu.memory_space<smem>>
    %c39 = arith.constant 39 : index
    %46 = memref.load %arg4[%c39] : memref<54xf32, #tpu.memory_space<smem>>
    %c40 = arith.constant 40 : index
    %47 = memref.load %arg4[%c40] : memref<54xf32, #tpu.memory_space<smem>>
    %c41 = arith.constant 41 : index
    %48 = memref.load %arg4[%c41] : memref<54xf32, #tpu.memory_space<smem>>
    %c42 = arith.constant 42 : index
    %49 = memref.load %arg4[%c42] : memref<54xf32, #tpu.memory_space<smem>>
    %c43 = arith.constant 43 : index
    %50 = memref.load %arg4[%c43] : memref<54xf32, #tpu.memory_space<smem>>
    %c44 = arith.constant 44 : index
    %51 = memref.load %arg4[%c44] : memref<54xf32, #tpu.memory_space<smem>>
    %c45 = arith.constant 45 : index
    %52 = memref.load %arg4[%c45] : memref<54xf32, #tpu.memory_space<smem>>
    %c46 = arith.constant 46 : index
    %53 = memref.load %arg4[%c46] : memref<54xf32, #tpu.memory_space<smem>>
    %c47 = arith.constant 47 : index
    %54 = memref.load %arg4[%c47] : memref<54xf32, #tpu.memory_space<smem>>
    %c48 = arith.constant 48 : index
    %55 = memref.load %arg4[%c48] : memref<54xf32, #tpu.memory_space<smem>>
    %c49 = arith.constant 49 : index
    %56 = memref.load %arg4[%c49] : memref<54xf32, #tpu.memory_space<smem>>
    %c50 = arith.constant 50 : index
    %57 = memref.load %arg4[%c50] : memref<54xf32, #tpu.memory_space<smem>>
    %c51 = arith.constant 51 : index
    %58 = memref.load %arg4[%c51] : memref<54xf32, #tpu.memory_space<smem>>
    %c52 = arith.constant 52 : index
    %59 = memref.load %arg4[%c52] : memref<54xf32, #tpu.memory_space<smem>>
    %c53 = arith.constant 53 : index
    %60 = memref.load %arg4[%c53] : memref<54xf32, #tpu.memory_space<smem>>
    %c0_9 = arith.constant 0 : index
    %61 = memref.load %arg5[%c0_9] : memref<1xf32, #tpu.memory_space<smem>>
    %cst = arith.constant 0.000000e+00 : f32
    %62 = vector.broadcast %cst : f32 to vector<4x1x128xf32>
    %63 = vector.extract_strided_slice %5 {offsets = [0, 0, 0], sizes = [4, 7, 128], strides = [1, 1, 1]} : vector<4x8x128xf32> to vector<4x7x128xf32>
    %64 = tpu.concatenate %62, %63 in 1 : vector<4x1x128xf32>, vector<4x7x128xf32> -> vector<4x8x128xf32>
    %65 = vector.extract_strided_slice %5 {offsets = [0, 1, 0], sizes = [4, 7, 128], strides = [1, 1, 1]} : vector<4x8x128xf32> to vector<4x7x128xf32>
    %66 = tpu.concatenate %65, %62 in 1 : vector<4x7x128xf32>, vector<4x1x128xf32> -> vector<4x8x128xf32>
    %67 = vector.extract_strided_slice %6 {offsets = [0, 0, 0], sizes = [4, 7, 128], strides = [1, 1, 1]} : vector<4x8x128xf32> to vector<4x7x128xf32>
    %68 = tpu.concatenate %62, %67 in 1 : vector<4x1x128xf32>, vector<4x7x128xf32> -> vector<4x8x128xf32>
    %69 = vector.extract_strided_slice %6 {offsets = [0, 1, 0], sizes = [4, 7, 128], strides = [1, 1, 1]} : vector<4x8x128xf32> to vector<4x7x128xf32>
    %70 = tpu.concatenate %69, %62 in 1 : vector<4x7x128xf32>, vector<4x1x128xf32> -> vector<4x8x128xf32>
    %71 = tpu.iota {dimensions = array<i32: 2>} : vector<4x8x128xi32>
    %c15_i32 = arith.constant 15 : i32
    %72 = vector.broadcast %c15_i32 : i32 to vector<4x8x128xi32>
    %73 = arith.andi %71, %72 : vector<4x8x128xi32>
    %c112_i32 = arith.constant 112 : i32
    %74 = vector.broadcast %c112_i32 : i32 to vector<4x8x128xi32>
    %75 = arith.cmpi slt, %71, %74 : vector<4x8x128xi32>
    %c16_i32 = arith.constant 16 : i32
    %76 = vector.broadcast %c16_i32 : i32 to vector<4x8x128xi32>
    %77 = arith.cmpi sge, %71, %76 : vector<4x8x128xi32>
    %c15_i32_10 = arith.constant 15 : i32
    %78 = vector.broadcast %c15_i32_10 : i32 to vector<4x8x128xi32>
    %79 = arith.cmpi slt, %73, %78 : vector<4x8x128xi32>
    %c1_i32 = arith.constant 1 : i32
    %80 = vector.broadcast %c1_i32 : i32 to vector<4x8x128xi32>
    %81 = arith.cmpi sge, %73, %80 : vector<4x8x128xi32>
    %82 = vector.broadcast %61 : f32 to vector<4x8x128xf32>
    %83 = vector.broadcast %7 : f32 to vector<4x8x128xf32>
    %84 = arith.mulf %83, %64 : vector<4x8x128xf32>
    %85 = vector.broadcast %16 : f32 to vector<4x8x128xf32>
    %86 = arith.mulf %85, %5 : vector<4x8x128xf32>
    %87 = arith.addf %84, %86 : vector<4x8x128xf32>
    %88 = vector.broadcast %25 : f32 to vector<4x8x128xf32>
    %89 = arith.mulf %88, %66 : vector<4x8x128xf32>
    %90 = arith.addf %87, %89 : vector<4x8x128xf32>
    %cst_11 = arith.constant 0.333333343 : f32
    %91 = arith.mulf %34, %cst_11 : f32
    %92 = vector.broadcast %91 : f32 to vector<4x8x128xf32>
    %93 = arith.mulf %92, %68 : vector<4x8x128xf32>
    %94 = arith.addf %90, %93 : vector<4x8x128xf32>
    %cst_12 = arith.constant 0.333333343 : f32
    %95 = arith.mulf %43, %cst_12 : f32
    %96 = vector.broadcast %95 : f32 to vector<4x8x128xf32>
    %97 = arith.mulf %96, %6 : vector<4x8x128xf32>
    %98 = arith.addf %94, %97 : vector<4x8x128xf32>
    %cst_13 = arith.constant 0.333333343 : f32
    %99 = arith.mulf %52, %cst_13 : f32
    %100 = vector.broadcast %99 : f32 to vector<4x8x128xf32>
    %101 = arith.mulf %100, %70 : vector<4x8x128xf32>
    %102 = arith.addf %98, %101 : vector<4x8x128xf32>
    %103 = vector.extract_strided_slice %102 {offsets = [0, 0, 111], sizes = [4, 8, 17], strides = [1, 1, 1]} : vector<4x8x128xf32> to vector<4x8x17xf32>
    %104 = vector.extract_strided_slice %102 {offsets = [0, 0, 0], sizes = [4, 8, 111], strides = [1, 1, 1]} : vector<4x8x128xf32> to vector<4x8x111xf32>
    %105 = tpu.concatenate %103, %104 in 2 : vector<4x8x17xf32>, vector<4x8x111xf32> -> vector<4x8x128xf32>
    %106 = arith.andi %77, %81 : vector<4x8x128xi1>
    %cst_14 = arith.constant 0.000000e+00 : f32
    %107 = vector.broadcast %cst_14 : f32 to vector<4x8x128xf32>
    %108 = arith.select %106, %105, %107 : vector<4x8x128xi1>, vector<4x8x128xf32>
    %109 = arith.addf %82, %108 : vector<4x8x128xf32>
    %110 = vector.broadcast %8 : f32 to vector<4x8x128xf32>
    %111 = arith.mulf %110, %64 : vector<4x8x128xf32>
    %112 = vector.broadcast %17 : f32 to vector<4x8x128xf32>
    %113 = arith.mulf %112, %5 : vector<4x8x128xf32>
    %114 = arith.addf %111, %113 : vector<4x8x128xf32>
    %115 = vector.broadcast %26 : f32 to vector<4x8x128xf32>
    %116 = arith.mulf %115, %66 : vector<4x8x128xf32>
    %117 = arith.addf %114, %116 : vector<4x8x128xf32>
    %cst_15 = arith.constant 0.333333343 : f32
    %118 = arith.mulf %35, %cst_15 : f32
    %119 = vector.broadcast %118 : f32 to vector<4x8x128xf32>
    %120 = arith.mulf %119, %68 : vector<4x8x128xf32>
    %121 = arith.addf %117, %120 : vector<4x8x128xf32>
    %cst_16 = arith.constant 0.333333343 : f32
    %122 = arith.mulf %44, %cst_16 : f32
    %123 = vector.broadcast %122 : f32 to vector<4x8x128xf32>
    %124 = arith.mulf %123, %6 : vector<4x8x128xf32>
    %125 = arith.addf %121, %124 : vector<4x8x128xf32>
    %cst_17 = arith.constant 0.333333343 : f32
    %126 = arith.mulf %53, %cst_17 : f32
    %127 = vector.broadcast %126 : f32 to vector<4x8x128xf32>
    %128 = arith.mulf %127, %70 : vector<4x8x128xf32>
    %129 = arith.addf %125, %128 : vector<4x8x128xf32>
    %130 = vector.extract_strided_slice %129 {offsets = [0, 0, 112], sizes = [4, 8, 16], strides = [1, 1, 1]} : vector<4x8x128xf32> to vector<4x8x16xf32>
    %131 = vector.extract_strided_slice %129 {offsets = [0, 0, 0], sizes = [4, 8, 112], strides = [1, 1, 1]} : vector<4x8x128xf32> to vector<4x8x112xf32>
    %132 = tpu.concatenate %130, %131 in 2 : vector<4x8x16xf32>, vector<4x8x112xf32> -> vector<4x8x128xf32>
    %cst_18 = arith.constant 0.000000e+00 : f32
    %133 = vector.broadcast %cst_18 : f32 to vector<4x8x128xf32>
    %134 = arith.select %77, %132, %133 : vector<4x8x128xi1>, vector<4x8x128xf32>
    %135 = arith.addf %109, %134 : vector<4x8x128xf32>
    %136 = vector.broadcast %9 : f32 to vector<4x8x128xf32>
    %137 = arith.mulf %136, %64 : vector<4x8x128xf32>
    %138 = vector.broadcast %18 : f32 to vector<4x8x128xf32>
    %139 = arith.mulf %138, %5 : vector<4x8x128xf32>
    %140 = arith.addf %137, %139 : vector<4x8x128xf32>
    %141 = vector.broadcast %27 : f32 to vector<4x8x128xf32>
    %142 = arith.mulf %141, %66 : vector<4x8x128xf32>
    %143 = arith.addf %140, %142 : vector<4x8x128xf32>
    %cst_19 = arith.constant 0.333333343 : f32
    %144 = arith.mulf %36, %cst_19 : f32
    %145 = vector.broadcast %144 : f32 to vector<4x8x128xf32>
    %146 = arith.mulf %145, %68 : vector<4x8x128xf32>
    %147 = arith.addf %143, %146 : vector<4x8x128xf32>
    %cst_20 = arith.constant 0.333333343 : f32
    %148 = arith.mulf %45, %cst_20 : f32
    %149 = vector.broadcast %148 : f32 to vector<4x8x128xf32>
    %150 = arith.mulf %149, %6 : vector<4x8x128xf32>
    %151 = arith.addf %147, %150 : vector<4x8x128xf32>
    %cst_21 = arith.constant 0.333333343 : f32
    %152 = arith.mulf %54, %cst_21 : f32
    %153 = vector.broadcast %152 : f32 to vector<4x8x128xf32>
    %154 = arith.mulf %153, %70 : vector<4x8x128xf32>
    %155 = arith.addf %151, %154 : vector<4x8x128xf32>
    %156 = vector.extract_strided_slice %155 {offsets = [0, 0, 113], sizes = [4, 8, 15], strides = [1, 1, 1]} : vector<4x8x128xf32> to vector<4x8x15xf32>
    %157 = vector.extract_strided_slice %155 {offsets = [0, 0, 0], sizes = [4, 8, 113], strides = [1, 1, 1]} : vector<4x8x128xf32> to vector<4x8x113xf32>
    %158 = tpu.concatenate %156, %157 in 2 : vector<4x8x15xf32>, vector<4x8x113xf32> -> vector<4x8x128xf32>
    %159 = arith.andi %77, %79 : vector<4x8x128xi1>
    %cst_22 = arith.constant 0.000000e+00 : f32
    %160 = vector.broadcast %cst_22 : f32 to vector<4x8x128xf32>
    %161 = arith.select %159, %158, %160 : vector<4x8x128xi1>, vector<4x8x128xf32>
    %162 = arith.addf %135, %161 : vector<4x8x128xf32>
    %163 = vector.broadcast %10 : f32 to vector<4x8x128xf32>
    %164 = arith.mulf %163, %64 : vector<4x8x128xf32>
    %165 = vector.broadcast %19 : f32 to vector<4x8x128xf32>
    %166 = arith.mulf %165, %5 : vector<4x8x128xf32>
    %167 = arith.addf %164, %166 : vector<4x8x128xf32>
    %168 = vector.broadcast %28 : f32 to vector<4x8x128xf32>
    %169 = arith.mulf %168, %66 : vector<4x8x128xf32>
    %170 = arith.addf %167, %169 : vector<4x8x128xf32>
    %cst_23 = arith.constant 0.333333343 : f32
    %171 = arith.mulf %37, %cst_23 : f32
    %172 = vector.broadcast %171 : f32 to vector<4x8x128xf32>
    %173 = arith.mulf %172, %68 : vector<4x8x128xf32>
    %174 = arith.addf %170, %173 : vector<4x8x128xf32>
    %cst_24 = arith.constant 0.333333343 : f32
    %175 = arith.mulf %46, %cst_24 : f32
    %176 = vector.broadcast %175 : f32 to vector<4x8x128xf32>
    %177 = arith.mulf %176, %6 : vector<4x8x128xf32>
    %178 = arith.addf %174, %177 : vector<4x8x128xf32>
    %cst_25 = arith.constant 0.333333343 : f32
    %179 = arith.mulf %55, %cst_25 : f32
    %180 = vector.broadcast %179 : f32 to vector<4x8x128xf32>
    %181 = arith.mulf %180, %70 : vector<4x8x128xf32>
    %182 = arith.addf %178, %181 : vector<4x8x128xf32>
    %183 = vector.extract_strided_slice %182 {offsets = [0, 0, 127], sizes = [4, 8, 1], strides = [1, 1, 1]} : vector<4x8x128xf32> to vector<4x8x1xf32>
    %184 = vector.extract_strided_slice %182 {offsets = [0, 0, 0], sizes = [4, 8, 127], strides = [1, 1, 1]} : vector<4x8x128xf32> to vector<4x8x127xf32>
    %185 = tpu.concatenate %183, %184 in 2 : vector<4x8x1xf32>, vector<4x8x127xf32> -> vector<4x8x128xf32>
    %cst_26 = arith.constant 0.000000e+00 : f32
    %186 = vector.broadcast %cst_26 : f32 to vector<4x8x128xf32>
    %187 = arith.select %81, %185, %186 : vector<4x8x128xi1>, vector<4x8x128xf32>
    %188 = arith.addf %162, %187 : vector<4x8x128xf32>
    %189 = vector.broadcast %11 : f32 to vector<4x8x128xf32>
    %190 = arith.mulf %189, %64 : vector<4x8x128xf32>
    %191 = vector.broadcast %20 : f32 to vector<4x8x128xf32>
    %192 = arith.mulf %191, %5 : vector<4x8x128xf32>
    %193 = arith.addf %190, %192 : vector<4x8x128xf32>
    %194 = vector.broadcast %29 : f32 to vector<4x8x128xf32>
    %195 = arith.mulf %194, %66 : vector<4x8x128xf32>
    %196 = arith.addf %193, %195 : vector<4x8x128xf32>
    %cst_27 = arith.constant 0.333333343 : f32
    %197 = arith.mulf %38, %cst_27 : f32
    %198 = vector.broadcast %197 : f32 to vector<4x8x128xf32>
    %199 = arith.mulf %198, %68 : vector<4x8x128xf32>
    %200 = arith.addf %196, %199 : vector<4x8x128xf32>
    %cst_28 = arith.constant 0.333333343 : f32
    %201 = arith.mulf %47, %cst_28 : f32
    %202 = vector.broadcast %201 : f32 to vector<4x8x128xf32>
    %203 = arith.mulf %202, %6 : vector<4x8x128xf32>
    %204 = arith.addf %200, %203 : vector<4x8x128xf32>
    %cst_29 = arith.constant 0.333333343 : f32
    %205 = arith.mulf %56, %cst_29 : f32
    %206 = vector.broadcast %205 : f32 to vector<4x8x128xf32>
    %207 = arith.mulf %206, %70 : vector<4x8x128xf32>
    %208 = arith.addf %204, %207 : vector<4x8x128xf32>
    %209 = arith.addf %188, %208 : vector<4x8x128xf32>
    %210 = vector.broadcast %12 : f32 to vector<4x8x128xf32>
    %211 = arith.mulf %210, %64 : vector<4x8x128xf32>
    %212 = vector.broadcast %21 : f32 to vector<4x8x128xf32>
    %213 = arith.mulf %212, %5 : vector<4x8x128xf32>
    %214 = arith.addf %211, %213 : vector<4x8x128xf32>
    %215 = vector.broadcast %30 : f32 to vector<4x8x128xf32>
    %216 = arith.mulf %215, %66 : vector<4x8x128xf32>
    %217 = arith.addf %214, %216 : vector<4x8x128xf32>
    %cst_30 = arith.constant 0.333333343 : f32
    %218 = arith.mulf %39, %cst_30 : f32
    %219 = vector.broadcast %218 : f32 to vector<4x8x128xf32>
    %220 = arith.mulf %219, %68 : vector<4x8x128xf32>
    %221 = arith.addf %217, %220 : vector<4x8x128xf32>
    %cst_31 = arith.constant 0.333333343 : f32
    %222 = arith.mulf %48, %cst_31 : f32
    %223 = vector.broadcast %222 : f32 to vector<4x8x128xf32>
    %224 = arith.mulf %223, %6 : vector<4x8x128xf32>
    %225 = arith.addf %221, %224 : vector<4x8x128xf32>
    %cst_32 = arith.constant 0.333333343 : f32
    %226 = arith.mulf %57, %cst_32 : f32
    %227 = vector.broadcast %226 : f32 to vector<4x8x128xf32>
    %228 = arith.mulf %227, %70 : vector<4x8x128xf32>
    %229 = arith.addf %225, %228 : vector<4x8x128xf32>
    %230 = vector.extract_strided_slice %229 {offsets = [0, 0, 1], sizes = [4, 8, 127], strides = [1, 1, 1]} : vector<4x8x128xf32> to vector<4x8x127xf32>
    %231 = vector.extract_strided_slice %229 {offsets = [0, 0, 0], sizes = [4, 8, 1], strides = [1, 1, 1]} : vector<4x8x128xf32> to vector<4x8x1xf32>
    %232 = tpu.concatenate %230, %231 in 2 : vector<4x8x127xf32>, vector<4x8x1xf32> -> vector<4x8x128xf32>
    %cst_33 = arith.constant 0.000000e+00 : f32
    %233 = vector.broadcast %cst_33 : f32 to vector<4x8x128xf32>
    %234 = arith.select %79, %232, %233 : vector<4x8x128xi1>, vector<4x8x128xf32>
    %235 = arith.addf %209, %234 : vector<4x8x128xf32>
    %236 = vector.broadcast %13 : f32 to vector<4x8x128xf32>
    %237 = arith.mulf %236, %64 : vector<4x8x128xf32>
    %238 = vector.broadcast %22 : f32 to vector<4x8x128xf32>
    %239 = arith.mulf %238, %5 : vector<4x8x128xf32>
    %240 = arith.addf %237, %239 : vector<4x8x128xf32>
    %241 = vector.broadcast %31 : f32 to vector<4x8x128xf32>
    %242 = arith.mulf %241, %66 : vector<4x8x128xf32>
    %243 = arith.addf %240, %242 : vector<4x8x128xf32>
    %cst_34 = arith.constant 0.333333343 : f32
    %244 = arith.mulf %40, %cst_34 : f32
    %245 = vector.broadcast %244 : f32 to vector<4x8x128xf32>
    %246 = arith.mulf %245, %68 : vector<4x8x128xf32>
    %247 = arith.addf %243, %246 : vector<4x8x128xf32>
    %cst_35 = arith.constant 0.333333343 : f32
    %248 = arith.mulf %49, %cst_35 : f32
    %249 = vector.broadcast %248 : f32 to vector<4x8x128xf32>
    %250 = arith.mulf %249, %6 : vector<4x8x128xf32>
    %251 = arith.addf %247, %250 : vector<4x8x128xf32>
    %cst_36 = arith.constant 0.333333343 : f32
    %252 = arith.mulf %58, %cst_36 : f32
    %253 = vector.broadcast %252 : f32 to vector<4x8x128xf32>
    %254 = arith.mulf %253, %70 : vector<4x8x128xf32>
    %255 = arith.addf %251, %254 : vector<4x8x128xf32>
    %256 = vector.extract_strided_slice %255 {offsets = [0, 0, 15], sizes = [4, 8, 113], strides = [1, 1, 1]} : vector<4x8x128xf32> to vector<4x8x113xf32>
    %257 = vector.extract_strided_slice %255 {offsets = [0, 0, 0], sizes = [4, 8, 15], strides = [1, 1, 1]} : vector<4x8x128xf32> to vector<4x8x15xf32>
    %258 = tpu.concatenate %256, %257 in 2 : vector<4x8x113xf32>, vector<4x8x15xf32> -> vector<4x8x128xf32>
    %259 = arith.andi %75, %81 : vector<4x8x128xi1>
    %cst_37 = arith.constant 0.000000e+00 : f32
    %260 = vector.broadcast %cst_37 : f32 to vector<4x8x128xf32>
    %261 = arith.select %259, %258, %260 : vector<4x8x128xi1>, vector<4x8x128xf32>
    %262 = arith.addf %235, %261 : vector<4x8x128xf32>
    %263 = vector.broadcast %14 : f32 to vector<4x8x128xf32>
    %264 = arith.mulf %263, %64 : vector<4x8x128xf32>
    %265 = vector.broadcast %23 : f32 to vector<4x8x128xf32>
    %266 = arith.mulf %265, %5 : vector<4x8x128xf32>
    %267 = arith.addf %264, %266 : vector<4x8x128xf32>
    %268 = vector.broadcast %32 : f32 to vector<4x8x128xf32>
    %269 = arith.mulf %268, %66 : vector<4x8x128xf32>
    %270 = arith.addf %267, %269 : vector<4x8x128xf32>
    %cst_38 = arith.constant 0.333333343 : f32
    %271 = arith.mulf %41, %cst_38 : f32
    %272 = vector.broadcast %271 : f32 to vector<4x8x128xf32>
    %273 = arith.mulf %272, %68 : vector<4x8x128xf32>
    %274 = arith.addf %270, %273 : vector<4x8x128xf32>
    %cst_39 = arith.constant 0.333333343 : f32
    %275 = arith.mulf %50, %cst_39 : f32
    %276 = vector.broadcast %275 : f32 to vector<4x8x128xf32>
    %277 = arith.mulf %276, %6 : vector<4x8x128xf32>
    %278 = arith.addf %274, %277 : vector<4x8x128xf32>
    %cst_40 = arith.constant 0.333333343 : f32
    %279 = arith.mulf %59, %cst_40 : f32
    %280 = vector.broadcast %279 : f32 to vector<4x8x128xf32>
    %281 = arith.mulf %280, %70 : vector<4x8x128xf32>
    %282 = arith.addf %278, %281 : vector<4x8x128xf32>
    %283 = vector.extract_strided_slice %282 {offsets = [0, 0, 16], sizes = [4, 8, 112], strides = [1, 1, 1]} : vector<4x8x128xf32> to vector<4x8x112xf32>
    %284 = vector.extract_strided_slice %282 {offsets = [0, 0, 0], sizes = [4, 8, 16], strides = [1, 1, 1]} : vector<4x8x128xf32> to vector<4x8x16xf32>
    %285 = tpu.concatenate %283, %284 in 2 : vector<4x8x112xf32>, vector<4x8x16xf32> -> vector<4x8x128xf32>
    %cst_41 = arith.constant 0.000000e+00 : f32
    %286 = vector.broadcast %cst_41 : f32 to vector<4x8x128xf32>
    %287 = arith.select %75, %285, %286 : vector<4x8x128xi1>, vector<4x8x128xf32>
    %288 = arith.addf %262, %287 : vector<4x8x128xf32>
    %289 = vector.broadcast %15 : f32 to vector<4x8x128xf32>
    %290 = arith.mulf %289, %64 : vector<4x8x128xf32>
    %291 = vector.broadcast %24 : f32 to vector<4x8x128xf32>
    %292 = arith.mulf %291, %5 : vector<4x8x128xf32>
    %293 = arith.addf %290, %292 : vector<4x8x128xf32>
    %294 = vector.broadcast %33 : f32 to vector<4x8x128xf32>
    %295 = arith.mulf %294, %66 : vector<4x8x128xf32>
    %296 = arith.addf %293, %295 : vector<4x8x128xf32>
    %cst_42 = arith.constant 0.333333343 : f32
    %297 = arith.mulf %42, %cst_42 : f32
    %298 = vector.broadcast %297 : f32 to vector<4x8x128xf32>
    %299 = arith.mulf %298, %68 : vector<4x8x128xf32>
    %300 = arith.addf %296, %299 : vector<4x8x128xf32>
    %cst_43 = arith.constant 0.333333343 : f32
    %301 = arith.mulf %51, %cst_43 : f32
    %302 = vector.broadcast %301 : f32 to vector<4x8x128xf32>
    %303 = arith.mulf %302, %6 : vector<4x8x128xf32>
    %304 = arith.addf %300, %303 : vector<4x8x128xf32>
    %cst_44 = arith.constant 0.333333343 : f32
    %305 = arith.mulf %60, %cst_44 : f32
    %306 = vector.broadcast %305 : f32 to vector<4x8x128xf32>
    %307 = arith.mulf %306, %70 : vector<4x8x128xf32>
    %308 = arith.addf %304, %307 : vector<4x8x128xf32>
    %309 = vector.extract_strided_slice %308 {offsets = [0, 0, 17], sizes = [4, 8, 111], strides = [1, 1, 1]} : vector<4x8x128xf32> to vector<4x8x111xf32>
    %310 = vector.extract_strided_slice %308 {offsets = [0, 0, 0], sizes = [4, 8, 17], strides = [1, 1, 1]} : vector<4x8x128xf32> to vector<4x8x17xf32>
    %311 = tpu.concatenate %309, %310 in 2 : vector<4x8x111xf32>, vector<4x8x17xf32> -> vector<4x8x128xf32>
    %312 = arith.andi %75, %79 : vector<4x8x128xi1>
    %cst_45 = arith.constant 0.000000e+00 : f32
    %313 = vector.broadcast %cst_45 : f32 to vector<4x8x128xf32>
    %314 = arith.select %312, %311, %313 : vector<4x8x128xi1>, vector<4x8x128xf32>
    %315 = arith.addf %288, %314 : vector<4x8x128xf32>
    %cst_46 = arith.constant 0.000000e+00 : f32
    %316 = vector.broadcast %cst_46 : f32 to vector<4x8x128xf32>
    %317 = arith.maximumf %315, %316 : vector<4x8x128xf32>
    %318 = arith.addf %317, %0 : vector<4x8x128xf32>
    %c0_47 = arith.constant 0 : index
    %c0_48 = arith.constant 0 : index
    %c0_49 = arith.constant 0 : index
    %319 = vector.load %arg6[%c0_47, %c0_48, %c0_49] : memref<4x8x128xf32, #tpu.memory_space<vmem>>, vector<4x8x128xf32>
    tpu.vector_store %arg6[%c0_47, %c0_48, %c0_49], %318 {strides = array<i32>} : memref<4x8x128xf32, #tpu.memory_space<vmem>>, vector<4x8x128xf32>,
    return
  }
  func.func @transform_0(%arg0: i32) -> (i32, i32, i32) {
    %c0_i32 = arith.constant 0 : i32
    %c0_i32_0 = arith.constant 0 : i32
    %c0_i32_1 = arith.constant 0 : i32
    return %arg0, %c0_i32, %c0_i32_0 : i32, i32, i32
  }
  func.func @transform_1(%arg0: i32) -> (i32, i32, i32) {
    %c0_i32 = arith.constant 0 : i32
    %c0_i32_0 = arith.constant 0 : i32
    %c0_i32_1 = arith.constant 0 : i32
    return %arg0, %c0_i32, %c0_i32_0 : i32, i32, i32
  }
  func.func @transform_2(%arg0: i32) -> (i32, i32, i32) {
    %c0_i32 = arith.constant 0 : i32
    %c0_i32_0 = arith.constant 0 : i32
    %c0_i32_1 = arith.constant 0 : i32
    return %arg0, %c0_i32, %c0_i32_0 : i32, i32, i32
  }
  func.func @transform_3(%arg0: i32) -> i32 {
    %c0_i32 = arith.constant 0 : i32
    %c0_i32_0 = arith.constant 0 : i32
    return %c0_i32 : i32
  }
  func.func @transform_4(%arg0: i32) -> i32 {
    %c0_i32 = arith.constant 0 : i32
    %c0_i32_0 = arith.constant 0 : i32
    return %c0_i32 : i32
  }
  func.func @transform_5(%arg0: i32) -> (i32, i32, i32) {
    %c0_i32 = arith.constant 0 : i32
    %c0_i32_0 = arith.constant 0 : i32
    %c0_i32_1 = arith.constant 0 : i32
    return %arg0, %c0_i32, %c0_i32_0 : i32, i32, i32
  }
}

</mosaic_0001>

<llo_original>
// kernel: tpu_custom_call.1
$region0: #{tpu_custom_call.1}
  #allocation0 [shape = 'u32[]', space=smem, size = 0x4, offset = 0x4, fixed_abs, tag = 'smem constant byte address 0x4 - core index']
  #allocation1 [shape = 'u32[144,128]{1,0:T(1,128)}', space=vmem, size = 0x12000, scoped, tag = 'internal scratch']
  #allocation2 [shape = 'f32[1]{0:T(128)S(6)}', space=smem, size = 0x200, scoped, tag = 'scoped memory for tpu_custom_call.1']
  %s0 = inlined_call_operand.hbm [shape: f32[4,8,128], index: 0, kind: input, shape index: {}]
  %s1 = inlined_call_operand.hbm [shape: f32[4,8,128], index: 1, kind: input, shape index: {}]
  %s2 = inlined_call_operand.hbm [shape: f32[4,8,128], index: 2, kind: input, shape index: {}]
  %s3 = inlined_call_operand.vmem [shape: f32[54], index: 3, kind: input, shape index: {}]
  %s4 = inlined_call_operand.<no memory space> [shape: f32[1], index: 4, kind: input, shape index: {}]
  %s5 = inlined_call_operand.hbm [shape: f32[4,8,128], index: 5, kind: output, shape index: {}]
  %s6 = sld [smem:[#allocation0]]
  $region46: #{tpu_custom_call.1} parent=0
    _
  %s8 = ssub.s32 1, %s6
  %s9 = scalar_select 0, %s8, %s6
  %10 = sst [smem:[#allocation2]] %s4
  $region1: #{tpu_custom_call.1} parent=0
    #allocation3 [shape = 'u8[16384]{0}', space=vmem, size = 0x4000, scoped, tag = 'input window, operand 0, single buffered']
    #allocation4 [shape = 's32[1]{0}', space=sflag, size = 0x4, scoped, tag = 'scoped memory for tpu_custom_call.1']
    #allocation5 [shape = 's32[1]{0}', space=sflag, size = 0x4, scoped, tag = 'scoped memory for tpu_custom_call.1']
    #allocation6 [shape = 's32[1]{0}', space=sflag, size = 0x4, scoped, tag = 'scoped memory for tpu_custom_call.1']
    #allocation7 [shape = 'u8[16384]{0}', space=vmem, size = 0x4000, scoped, tag = 'input window, operand 1, single buffered']
    #allocation8 [shape = 's32[1]{0}', space=sflag, size = 0x4, scoped, tag = 'scoped memory for tpu_custom_call.1']
    #allocation9 [shape = 'u8[16384]{0}', space=vmem, size = 0x4000, scoped, tag = 'input window, operand 2, single buffered']
    #allocation10 [shape = 'u8[512]{0}', space=smem, size = 0x200, scoped, tag = 'input window, operand 3, single buffered']
    #allocation11 [shape = 'u8[16384]{0}', space=vmem, size = 0x4000, scoped, tag = 'output window, operand 0, single buffered']
    %11 = vsyncpa [#allocation4], 0
    %12 = vsyncpa [#allocation8], 0
    %13 = vsyncpa [#allocation6], 0
    %14 = vsyncpa [#allocation5], 0
    // Predicated region
    $region2: #{tpu_custom_call.1} parent=1 // pred_check
      _
    $region3: #{tpu_custom_call.1} parent=1 // pred_check_branch
      %16 = sbr.rel (0) target = $region5
    $region4: #{tpu_custom_call.1} parent=1 // pred_region
      %s18 = ssub.s32 512, 512
      %19 = vsyncadd [#allocation4], %s18
      %s20 = sshll.u32 [#allocation3], 4
      %s21 = int_to_ptr.vmem [resolvable:$true] %s20
      %26 = dma.hbm_to_vmem [thread:$0]  %s0, 512, %s21, [#allocation4], 128, 128, 8
    $region5: #{tpu_custom_call.1} parent=1 // pred_fallthru
      _
    // Predicated region
    $region6: #{tpu_custom_call.1} parent=1 // pred_check
      _
    $region7: #{tpu_custom_call.1} parent=1 // pred_check_branch
      %28 = sbr.rel (0) target = $region9
    $region8: #{tpu_custom_call.1} parent=1 // pred_region
      %s30 = ssub.s32 512, 512
      %31 = vsyncadd [#allocation8], %s30
      %s32 = sshll.u32 [#allocation7], 4
      %s33 = int_to_ptr.vmem [resolvable:$true] %s32
      %38 = dma.hbm_to_vmem [thread:$0]  %s1, 512, %s33, [#allocation8], 128, 128, 8
    $region9: #{tpu_custom_call.1} parent=1 // pred_fallthru
      _
    // Predicated region
    $region10: #{tpu_custom_call.1} parent=1 // pred_check
      _
    $region11: #{tpu_custom_call.1} parent=1 // pred_check_branch
      %40 = sbr.rel (0) target = $region13
    $region12: #{tpu_custom_call.1} parent=1 // pred_region
      %s42 = ssub.s32 512, 512
      %43 = vsyncadd [#allocation8], %s42
      %s44 = sshll.u32 [#allocation9], 4
      %s45 = int_to_ptr.vmem [resolvable:$true] %s44
      %50 = dma.hbm_to_vmem [thread:$0]  %s2, 512, %s45, [#allocation8], 128, 128, 8
    $region13: #{tpu_custom_call.1} parent=1 // pred_fallthru
      _
    // Predicated region
    $region14: #{tpu_custom_call.1} parent=1 // pred_check
      _
    $region15: #{tpu_custom_call.1} parent=1 // pred_check_branch
      %52 = sbr.rel (0) target = $region17
    $region16: #{tpu_custom_call.1} parent=1 // pred_region
      %s54 = ssub.s32 16, 16
      %55 = vsyncadd [#allocation6], %s54
      %s57 = sshll.u32 %s3, 4
      %s58 = int_to_ptr.vmem [resolvable:$true] %s57
      %60 = dma.vmem_to_smem %s58, 16, [#allocation10], [#allocation6]
    $region17: #{tpu_custom_call.1} parent=1 // pred_fallthru
      _
    // Predicated region
    $region18: #{tpu_custom_call.1} parent=1 // pred_check
      _
    $region19: #{tpu_custom_call.1} parent=1 // pred_check_branch
      %62 = sbr.rel (0) target = $region21
    $region20: #{tpu_custom_call.1} parent=1 // pred_region
      _
    $region21: #{tpu_custom_call.1} parent=1 // pred_fallthru
      _
    // Predicated region
    $region22: #{tpu_custom_call.1} parent=1 // pred_check
      _
    $region23: #{tpu_custom_call.1} parent=1 // pred_check_branch
      %64 = sbr.rel (0) target = $region25
    $region24: #{tpu_custom_call.1} parent=1 // pred_region
      %65 = dma.done [#allocation4], 512
    $region25: #{tpu_custom_call.1} parent=1 // pred_fallthru
      _
    // Predicated region
    $region26: #{tpu_custom_call.1} parent=1 // pred_check
      _
    $region27: #{tpu_custom_call.1} parent=1 // pred_check_branch
      %67 = sbr.rel (0) target = $region29
    $region28: #{tpu_custom_call.1} parent=1 // pred_region
      %68 = dma.done [#allocation8], 512
    $region29: #{tpu_custom_call.1} parent=1 // pred_fallthru
      _
    // Predicated region
    $region30: #{tpu_custom_call.1} parent=1 // pred_check
      _
    $region31: #{tpu_custom_call.1} parent=1 // pred_check_branch
      %70 = sbr.rel (0) target = $region33
    $region32: #{tpu_custom_call.1} parent=1 // pred_region
      %71 = dma.done [#allocation8], 512
    $region33: #{tpu_custom_call.1} parent=1 // pred_fallthru
      _
    // Predicated region
    $region34: #{tpu_custom_call.1} parent=1 // pred_check
      _
    $region35: #{tpu_custom_call.1} parent=1 // pred_check_branch
      %73 = sbr.rel (0) target = $region37
    $region36: #{tpu_custom_call.1} parent=1 // pred_region
      %74 = dma.done [#allocation6], 16
    $region37: #{tpu_custom_call.1} parent=1 // pred_fallthru
      _
    %75 = sfence
    %v76 = vld [vmem:[#allocation3] sm:$0xff]
    %v77 = vld [vmem:[#allocation3 + $0x8] sm:$0xff]
    %v78 = vld [vmem:[#allocation3 + $0x10] sm:$0xff]
    %v79 = vld [vmem:[#allocation3 + $0x18] sm:$0xff]
    %v80 = vld [vmem:[#allocation7] sm:$0xff]
    %v81 = vld [vmem:[#allocation7 + $0x8] sm:$0xff]
    %v82 = vld [vmem:[#allocation7 + $0x10] sm:$0xff]
    %v83 = vld [vmem:[#allocation7 + $0x18] sm:$0xff]
    %v84 = vld [vmem:[#allocation9] sm:$0xff]
    %v85 = vld [vmem:[#allocation9 + $0x8] sm:$0xff]
    %v86 = vld [vmem:[#allocation9 + $0x10] sm:$0xff]
    %v87 = vld [vmem:[#allocation9 + $0x18] sm:$0xff]
    %v88 = vmax.f32 %v76, %v80
    %v89 = vmax.f32 %v77, %v81
    %v90 = vmax.f32 %v78, %v82
    %v91 = vmax.f32 %v79, %v83
    %v92 = vadd.f32 %v76, %v80
    %v93 = vadd.f32 %v77, %v81
    %v94 = vadd.f32 %v78, %v82
    %v95 = vadd.f32 %v79, %v83
    %v96 = vmax.f32 %v88, %v84
    %v97 = vmax.f32 %v89, %v85
    %v98 = vmax.f32 %v90, %v86
    %v99 = vmax.f32 %v91, %v87
    %v100 = vadd.f32 %v92, %v84
    %v101 = vadd.f32 %v93, %v85
    %v102 = vadd.f32 %v94, %v86
    %v103 = vadd.f32 %v95, %v87
    %s104 = sld [smem:[#allocation10]]
    %s105 = sld [smem:[#allocation10 + $0x1]]
    %s106 = sld [smem:[#allocation10 + $0x2]]
    %s107 = sld [smem:[#allocation10 + $0x3]]
    %s108 = sld [smem:[#allocation10 + $0x4]]
    %s109 = sld [smem:[#allocation10 + $0x5]]
    %s110 = sld [smem:[#allocation10 + $0x6]]
    %s111 = sld [smem:[#allocation10 + $0x7]]
    %s112 = sld [smem:[#allocation10 + $0x8]]
    %s113 = sld [smem:[#allocation10 + $0x9]]
    %s114 = sld [smem:[#allocation10 + $0xa]]
    %s115 = sld [smem:[#allocation10 + $0xb]]
    %s116 = sld [smem:[#allocation10 + $0xc]]
    %s117 = sld [smem:[#allocation10 + $0xd]]
    %s118 = sld [smem:[#allocation10 + $0xe]]
    %s119 = sld [smem:[#allocation10 + $0xf]]
    %s120 = sld [smem:[#allocation10 + $0x10]]
    %s121 = sld [smem:[#allocation10 + $0x11]]
    %s122 = sld [smem:[#allocation10 + $0x12]]
    %s123 = sld [smem:[#allocation10 + $0x13]]
    %s124 = sld [smem:[#allocation10 + $0x14]]
    %s125 = sld [smem:[#allocation10 + $0x15]]
    %s126 = sld [smem:[#allocation10 + $0x16]]
    %s127 = sld [smem:[#allocation10 + $0x17]]
    %s128 = sld [smem:[#allocation10 + $0x18]]
    %s129 = sld [smem:[#allocation10 + $0x19]]
    %s130 = sld [smem:[#allocation10 + $0x1a]]
    %s131 = sld [smem:[#allocation10 + $0x1b]]
    %s132 = sld [smem:[#allocation10 + $0x1c]]
    %s133 = sld [smem:[#allocation10 + $0x1d]]
    %s134 = sld [smem:[#allocation10 + $0x1e]]
    %s135 = sld [smem:[#allocation10 + $0x1f]]
    %s136 = sld [smem:[#allocation10 + $0x20]]
    %s137 = sld [smem:[#allocation10 + $0x21]]
    %s138 = sld [smem:[#allocation10 + $0x22]]
    %s139 = sld [smem:[#allocation10 + $0x23]]
    %s140 = sld [smem:[#allocation10 + $0x24]]
    %s141 = sld [smem:[#allocation10 + $0x25]]
    %s142 = sld [smem:[#allocation10 + $0x26]]
    %s143 = sld [smem:[#allocation10 + $0x27]]
    %s144 = sld [smem:[#allocation10 + $0x28]]
    %s145 = sld [smem:[#allocation10 + $0x29]]
    %s146 = sld [smem:[#allocation10 + $0x2a]]
    %s147 = sld [smem:[#allocation10 + $0x2b]]
    %s148 = sld [smem:[#allocation10 + $0x2c]]
    %s149 = sld [smem:[#allocation10 + $0x2d]]
    %s150 = sld [smem:[#allocation10 + $0x2e]]
    %s151 = sld [smem:[#allocation10 + $0x2f]]
    %s152 = sld [smem:[#allocation10 + $0x30]]
    %s153 = sld [smem:[#allocation10 + $0x31]]
    %s154 = sld [smem:[#allocation10 + $0x32]]
    %s155 = sld [smem:[#allocation10 + $0x33]]
    %s156 = sld [smem:[#allocation10 + $0x34]]
    %s157 = sld [smem:[#allocation10 + $0x35]]
    %s158 = sld [smem:[#allocation2]]
    %v163 = vrot.slane %v96, 7
    %v164 = vrot.slane %v97, 7
    %v165 = vrot.slane %v98, 7
    %v166 = vrot.slane %v99, 7
    %vm171 = vcmask 1040384
    %v172 = vsel %vm171, 0.0, %v163
    %v173 = vsel %vm171, 0.0, %v164
    %v174 = vsel %vm171, 0.0, %v165
    %v175 = vsel %vm171, 0.0, %v166
    %v176 = vrot.slane %v96, 1
    %v177 = vrot.slane %v97, 1
    %v178 = vrot.slane %v98, 1
    %v179 = vrot.slane %v99, 1
    %vm184 = vcmask 1046528
    %v185 = vsel %vm184, %v176, 0.0
    %v186 = vsel %vm184, %v177, 0.0
    %v187 = vsel %vm184, %v178, 0.0
    %v188 = vsel %vm184, %v179, 0.0
    %v193 = vrot.slane %v100, 7
    %v194 = vrot.slane %v101, 7
    %v195 = vrot.slane %v102, 7
    %v196 = vrot.slane %v103, 7
    %v201 = vsel %vm171, 0.0, %v193
    %v202 = vsel %vm171, 0.0, %v194
    %v203 = vsel %vm171, 0.0, %v195
    %v204 = vsel %vm171, 0.0, %v196
    %v205 = vrot.slane %v100, 1
    %v206 = vrot.slane %v101, 1
    %v207 = vrot.slane %v102, 1
    %v208 = vrot.slane %v103, 1
    %v213 = vsel %vm184, %v205, 0.0
    %v214 = vsel %vm184, %v206, 0.0
    %v215 = vsel %vm184, %v207, 0.0
    %v216 = vsel %vm184, %v208, 0.0
    %v217 = vlaneseq
    %v218 = vand.u32 %v217, 127
    %v219 = vand.u32 %v218, 15
    %vm220 = vcmp.lt.s32.totalorder %v218, 112
    %vm221 = vcmp.ge.s32.totalorder %v218, 16
    %vm222 = vcmp.lt.s32.totalorder %v219, 15
    %vm223 = vcmp.ge.s32.totalorder %v219, 1
    %v224 = vstv %s158
    %v225 = vstv %s104
    %v226 = vmul.f32 %v225, %v172
    %v227 = vmul.f32 %v225, %v173
    %v228 = vmul.f32 %v225, %v174
    %v229 = vmul.f32 %v225, %v175
    %v230 = vstv %s113
    %v231 = vmul.f32 %v230, %v96
    %v232 = vmul.f32 %v230, %v97
    %v233 = vmul.f32 %v230, %v98
    %v234 = vmul.f32 %v230, %v99
    %v235 = vadd.f32 %v226, %v231
    %v236 = vadd.f32 %v227, %v232
    %v237 = vadd.f32 %v228, %v233
    %v238 = vadd.f32 %v229, %v234
    %v239 = vstv %s122
    %v240 = vmul.f32 %v239, %v185
    %v241 = vmul.f32 %v239, %v186
    %v242 = vmul.f32 %v239, %v187
    %v243 = vmul.f32 %v239, %v188
    %v244 = vadd.f32 %v235, %v240
    %v245 = vadd.f32 %v236, %v241
    %v246 = vadd.f32 %v237, %v242
    %v247 = vadd.f32 %v238, %v243
    %s248 = smul.f32 %s131, 0.33333334
    %v249 = vstv %s248
    %v250 = vmul.f32 %v249, %v201
    %v251 = vmul.f32 %v249, %v202
    %v252 = vmul.f32 %v249, %v203
    %v253 = vmul.f32 %v249, %v204
    %v254 = vadd.f32 %v244, %v250
    %v255 = vadd.f32 %v245, %v251
    %v256 = vadd.f32 %v246, %v252
    %v257 = vadd.f32 %v247, %v253
    %s258 = smul.f32 %s140, 0.33333334
    %v259 = vstv %s258
    %v260 = vmul.f32 %v259, %v100
    %v261 = vmul.f32 %v259, %v101
    %v262 = vmul.f32 %v259, %v102
    %v263 = vmul.f32 %v259, %v103
    %v264 = vadd.f32 %v254, %v260
    %v265 = vadd.f32 %v255, %v261
    %v266 = vadd.f32 %v256, %v262
    %v267 = vadd.f32 %v257, %v263
    %s268 = smul.f32 %s149, 0.33333334
    %v269 = vstv %s268
    %v270 = vmul.f32 %v269, %v213
    %v271 = vmul.f32 %v269, %v214
    %v272 = vmul.f32 %v269, %v215
    %v273 = vmul.f32 %v269, %v216
    %v274 = vadd.f32 %v264, %v270
    %v275 = vadd.f32 %v265, %v271
    %v276 = vadd.f32 %v266, %v272
    %v277 = vadd.f32 %v267, %v273
    %282 = vrot.lane.b32.xlu0 %v274, 17
    %v283 = vpop.permute.xlu0 %282
    %284 = vrot.lane.b32.xlu0 %v275, 17
    %v285 = vpop.permute.xlu0 %284
    %286 = vrot.lane.b32.xlu0 %v276, 17
    %v287 = vpop.permute.xlu0 %286
    %288 = vrot.lane.b32.xlu0 %v277, 17
    %v289 = vpop.permute.xlu0 %288
    %vm294 = vmand %vm221, %vm223
    %v295 = vsel %vm294, %v283, 0.0
    %v296 = vsel %vm294, %v285, 0.0
    %v297 = vsel %vm294, %v287, 0.0
    %v298 = vsel %vm294, %v289, 0.0
    %v299 = vadd.f32 %v224, %v295
    %v300 = vadd.f32 %v224, %v296
    %v301 = vadd.f32 %v224, %v297
    %v302 = vadd.f32 %v224, %v298
    %v303 = vstv %s105
    %v304 = vmul.f32 %v303, %v172
    %v305 = vmul.f32 %v303, %v173
    %v306 = vmul.f32 %v303, %v174
    %v307 = vmul.f32 %v303, %v175
    %v308 = vstv %s114
    %v309 = vmul.f32 %v308, %v96
    %v310 = vmul.f32 %v308, %v97
    %v311 = vmul.f32 %v308, %v98
    %v312 = vmul.f32 %v308, %v99
    %v313 = vadd.f32 %v304, %v309
    %v314 = vadd.f32 %v305, %v310
    %v315 = vadd.f32 %v306, %v311
    %v316 = vadd.f32 %v307, %v312
    %v317 = vstv %s123
    %v318 = vmul.f32 %v317, %v185
    %v319 = vmul.f32 %v317, %v186
    %v320 = vmul.f32 %v317, %v187
    %v321 = vmul.f32 %v317, %v188
    %v322 = vadd.f32 %v313, %v318
    %v323 = vadd.f32 %v314, %v319
    %v324 = vadd.f32 %v315, %v320
    %v325 = vadd.f32 %v316, %v321
    %s326 = smul.f32 %s132, 0.33333334
    %v327 = vstv %s326
    %v328 = vmul.f32 %v327, %v201
    %v329 = vmul.f32 %v327, %v202
    %v330 = vmul.f32 %v327, %v203
    %v331 = vmul.f32 %v327, %v204
    %v332 = vadd.f32 %v322, %v328
    %v333 = vadd.f32 %v323, %v329
    %v334 = vadd.f32 %v324, %v330
    %v335 = vadd.f32 %v325, %v331
    %s336 = smul.f32 %s141, 0.33333334
    %v337 = vstv %s336
    %v338 = vmul.f32 %v337, %v100
    %v339 = vmul.f32 %v337, %v101
    %v340 = vmul.f32 %v337, %v102
    %v341 = vmul.f32 %v337, %v103
    %v342 = vadd.f32 %v332, %v338
    %v343 = vadd.f32 %v333, %v339
    %v344 = vadd.f32 %v334, %v340
    %v345 = vadd.f32 %v335, %v341
    %s346 = smul.f32 %s150, 0.33333334
    %v347 = vstv %s346
    %v348 = vmul.f32 %v347, %v213
    %v349 = vmul.f32 %v347, %v214
    %v350 = vmul.f32 %v347, %v215
    %v351 = vmul.f32 %v347, %v216
    %v352 = vadd.f32 %v342, %v348
    %v353 = vadd.f32 %v343, %v349
    %v354 = vadd.f32 %v344, %v350
    %v355 = vadd.f32 %v345, %v351
    %360 = vrot.lane.b32.xlu0 %v352, 16
    %v361 = vpop.permute.xlu0 %360
    %362 = vrot.lane.b32.xlu0 %v353, 16
    %v363 = vpop.permute.xlu0 %362
    %364 = vrot.lane.b32.xlu0 %v354, 16
    %v365 = vpop.permute.xlu0 %364
    %366 = vrot.lane.b32.xlu0 %v355, 16
    %v367 = vpop.permute.xlu0 %366
    %v372 = vsel %vm221, %v361, 0.0
    %v373 = vsel %vm221, %v363, 0.0
    %v374 = vsel %vm221, %v365, 0.0
    %v375 = vsel %vm221, %v367, 0.0
    %v376 = vadd.f32 %v299, %v372
    %v377 = vadd.f32 %v300, %v373
    %v378 = vadd.f32 %v301, %v374
    %v379 = vadd.f32 %v302, %v375
    %v380 = vstv %s106
    %v381 = vmul.f32 %v380, %v172
    %v382 = vmul.f32 %v380, %v173
    %v383 = vmul.f32 %v380, %v174
    %v384 = vmul.f32 %v380, %v175
    %v385 = vstv %s115
    %v386 = vmul.f32 %v385, %v96
    %v387 = vmul.f32 %v385, %v97
    %v388 = vmul.f32 %v385, %v98
    %v389 = vmul.f32 %v385, %v99
    %v390 = vadd.f32 %v381, %v386
    %v391 = vadd.f32 %v382, %v387
    %v392 = vadd.f32 %v383, %v388
    %v393 = vadd.f32 %v384, %v389
    %v394 = vstv %s124
    %v395 = vmul.f32 %v394, %v185
    %v396 = vmul.f32 %v394, %v186
    %v397 = vmul.f32 %v394, %v187
    %v398 = vmul.f32 %v394, %v188
    %v399 = vadd.f32 %v390, %v395
    %v400 = vadd.f32 %v391, %v396
    %v401 = vadd.f32 %v392, %v397
    %v402 = vadd.f32 %v393, %v398
    %s403 = smul.f32 %s133, 0.33333334
    %v404 = vstv %s403
    %v405 = vmul.f32 %v404, %v201
    %v406 = vmul.f32 %v404, %v202
    %v407 = vmul.f32 %v404, %v203
    %v408 = vmul.f32 %v404, %v204
    %v409 = vadd.f32 %v399, %v405
    %v410 = vadd.f32 %v400, %v406
    %v411 = vadd.f32 %v401, %v407
    %v412 = vadd.f32 %v402, %v408
    %s413 = smul.f32 %s142, 0.33333334
    %v414 = vstv %s413
    %v415 = vmul.f32 %v414, %v100
    %v416 = vmul.f32 %v414, %v101
    %v417 = vmul.f32 %v414, %v102
    %v418 = vmul.f32 %v414, %v103
    %v419 = vadd.f32 %v409, %v415
    %v420 = vadd.f32 %v410, %v416
    %v421 = vadd.f32 %v411, %v417
    %v422 = vadd.f32 %v412, %v418
    %s423 = smul.f32 %s151, 0.33333334
    %v424 = vstv %s423
    %v425 = vmul.f32 %v424, %v213
    %v426 = vmul.f32 %v424, %v214
    %v427 = vmul.f32 %v424, %v215
    %v428 = vmul.f32 %v424, %v216
    %v429 = vadd.f32 %v419, %v425
    %v430 = vadd.f32 %v420, %v426
    %v431 = vadd.f32 %v421, %v427
    %v432 = vadd.f32 %v422, %v428
    %437 = vrot.lane.b32.xlu0 %v429, 15
    %v438 = vpop.permute.xlu0 %437
    %439 = vrot.lane.b32.xlu0 %v430, 15
    %v440 = vpop.permute.xlu0 %439
    %441 = vrot.lane.b32.xlu0 %v431, 15
    %v442 = vpop.permute.xlu0 %441
    %443 = vrot.lane.b32.xlu0 %v432, 15
    %v444 = vpop.permute.xlu0 %443
    %vm449 = vmand %vm221, %vm222
    %v450 = vsel %vm449, %v438, 0.0
    %v451 = vsel %vm449, %v440, 0.0
    %v452 = vsel %vm449, %v442, 0.0
    %v453 = vsel %vm449, %v444, 0.0
    %v454 = vadd.f32 %v376, %v450
    %v455 = vadd.f32 %v377, %v451
    %v456 = vadd.f32 %v378, %v452
    %v457 = vadd.f32 %v379, %v453
    %v458 = vstv %s107
    %v459 = vmul.f32 %v458, %v172
    %v460 = vmul.f32 %v458, %v173
    %v461 = vmul.f32 %v458, %v174
    %v462 = vmul.f32 %v458, %v175
    %v463 = vstv %s116
    %v464 = vmul.f32 %v463, %v96
    %v465 = vmul.f32 %v463, %v97
    %v466 = vmul.f32 %v463, %v98
    %v467 = vmul.f32 %v463, %v99
    %v468 = vadd.f32 %v459, %v464
    %v469 = vadd.f32 %v460, %v465
    %v470 = vadd.f32 %v461, %v466
    %v471 = vadd.f32 %v462, %v467
    %v472 = vstv %s125
    %v473 = vmul.f32 %v472, %v185
    %v474 = vmul.f32 %v472, %v186
    %v475 = vmul.f32 %v472, %v187
    %v476 = vmul.f32 %v472, %v188
    %v477 = vadd.f32 %v468, %v473
    %v478 = vadd.f32 %v469, %v474
    %v479 = vadd.f32 %v470, %v475
    %v480 = vadd.f32 %v471, %v476
    %s481 = smul.f32 %s134, 0.33333334
    %v482 = vstv %s481
    %v483 = vmul.f32 %v482, %v201
    %v484 = vmul.f32 %v482, %v202
    %v485 = vmul.f32 %v482, %v203
    %v486 = vmul.f32 %v482, %v204
    %v487 = vadd.f32 %v477, %v483
    %v488 = vadd.f32 %v478, %v484
    %v489 = vadd.f32 %v479, %v485
    %v490 = vadd.f32 %v480, %v486
    %s491 = smul.f32 %s143, 0.33333334
    %v492 = vstv %s491
    %v493 = vmul.f32 %v492, %v100
    %v494 = vmul.f32 %v492, %v101
    %v495 = vmul.f32 %v492, %v102
    %v496 = vmul.f32 %v492, %v103
    %v497 = vadd.f32 %v487, %v493
    %v498 = vadd.f32 %v488, %v494
    %v499 = vadd.f32 %v489, %v495
    %v500 = vadd.f32 %v490, %v496
    %s501 = smul.f32 %s152, 0.33333334
    %v502 = vstv %s501
    %v503 = vmul.f32 %v502, %v213
    %v504 = vmul.f32 %v502, %v214
    %v505 = vmul.f32 %v502, %v215
    %v506 = vmul.f32 %v502, %v216
    %v507 = vadd.f32 %v497, %v503
    %v508 = vadd.f32 %v498, %v504
    %v509 = vadd.f32 %v499, %v505
    %v510 = vadd.f32 %v500, %v506
    %515 = vrot.lane.b32.xlu0 %v507, 1
    %v516 = vpop.permute.xlu0 %515
    %517 = vrot.lane.b32.xlu0 %v508, 1
    %v518 = vpop.permute.xlu0 %517
    %519 = vrot.lane.b32.xlu0 %v509, 1
    %v520 = vpop.permute.xlu0 %519
    %521 = vrot.lane.b32.xlu0 %v510, 1
    %v522 = vpop.permute.xlu0 %521
    %v527 = vsel %vm223, %v516, 0.0
    %v528 = vsel %vm223, %v518, 0.0
    %v529 = vsel %vm223, %v520, 0.0
    %v530 = vsel %vm223, %v522, 0.0
    %v531 = vadd.f32 %v454, %v527
    %v532 = vadd.f32 %v455, %v528
    %v533 = vadd.f32 %v456, %v529
    %v534 = vadd.f32 %v457, %v530
    %v535 = vstv %s108
    %v536 = vmul.f32 %v535, %v172
    %v537 = vmul.f32 %v535, %v173
    %v538 = vmul.f32 %v535, %v174
    %v539 = vmul.f32 %v535, %v175
    %v540 = vstv %s117
    %v541 = vmul.f32 %v540, %v96
    %v542 = vmul.f32 %v540, %v97
    %v543 = vmul.f32 %v540, %v98
    %v544 = vmul.f32 %v540, %v99
    %v545 = vadd.f32 %v536, %v541
    %v546 = vadd.f32 %v537, %v542
    %v547 = vadd.f32 %v538, %v543
    %v548 = vadd.f32 %v539, %v544
    %v549 = vstv %s126
    %v550 = vmul.f32 %v549, %v185
    %v551 = vmul.f32 %v549, %v186
    %v552 = vmul.f32 %v549, %v187
    %v553 = vmul.f32 %v549, %v188
    %v554 = vadd.f32 %v545, %v550
    %v555 = vadd.f32 %v546, %v551
    %v556 = vadd.f32 %v547, %v552
    %v557 = vadd.f32 %v548, %v553
    %s558 = smul.f32 %s135, 0.33333334
    %v559 = vstv %s558
    %v560 = vmul.f32 %v559, %v201
    %v561 = vmul.f32 %v559, %v202
    %v562 = vmul.f32 %v559, %v203
    %v563 = vmul.f32 %v559, %v204
    %v564 = vadd.f32 %v554, %v560
    %v565 = vadd.f32 %v555, %v561
    %v566 = vadd.f32 %v556, %v562
    %v567 = vadd.f32 %v557, %v563
    %s568 = smul.f32 %s144, 0.33333334
    %v569 = vstv %s568
    %v570 = vmul.f32 %v569, %v100
    %v571 = vmul.f32 %v569, %v101
    %v572 = vmul.f32 %v569, %v102
    %v573 = vmul.f32 %v569, %v103
    %v574 = vadd.f32 %v564, %v570
    %v575 = vadd.f32 %v565, %v571
    %v576 = vadd.f32 %v566, %v572
    %v577 = vadd.f32 %v567, %v573
    %s578 = smul.f32 %s153, 0.33333334
    %v579 = vstv %s578
    %v580 = vmul.f32 %v579, %v213
    %v581 = vmul.f32 %v579, %v214
    %v582 = vmul.f32 %v579, %v215
    %v583 = vmul.f32 %v579, %v216
    %v584 = vadd.f32 %v574, %v580
    %v585 = vadd.f32 %v575, %v581
    %v586 = vadd.f32 %v576, %v582
    %v587 = vadd.f32 %v577, %v583
    %v588 = vadd.f32 %v531, %v584
    %v589 = vadd.f32 %v532, %v585
    %v590 = vadd.f32 %v533, %v586
    %v591 = vadd.f32 %v534, %v587
    %v592 = vstv %s109
    %v593 = vmul.f32 %v592, %v172
    %v594 = vmul.f32 %v592, %v173
    %v595 = vmul.f32 %v592, %v174
    %v596 = vmul.f32 %v592, %v175
    %v597 = vstv %s118
    %v598 = vmul.f32 %v597, %v96
    %v599 = vmul.f32 %v597, %v97
    %v600 = vmul.f32 %v597, %v98
    %v601 = vmul.f32 %v597, %v99
    %v602 = vadd.f32 %v593, %v598
    %v603 = vadd.f32 %v594, %v599
    %v604 = vadd.f32 %v595, %v600
    %v605 = vadd.f32 %v596, %v601
    %v606 = vstv %s127
    %v607 = vmul.f32 %v606, %v185
    %v608 = vmul.f32 %v606, %v186
    %v609 = vmul.f32 %v606, %v187
    %v610 = vmul.f32 %v606, %v188
    %v611 = vadd.f32 %v602, %v607
    %v612 = vadd.f32 %v603, %v608
    %v613 = vadd.f32 %v604, %v609
    %v614 = vadd.f32 %v605, %v610
    %s615 = smul.f32 %s136, 0.33333334
    %v616 = vstv %s615
    %v617 = vmul.f32 %v616, %v201
    %v618 = vmul.f32 %v616, %v202
    %v619 = vmul.f32 %v616, %v203
    %v620 = vmul.f32 %v616, %v204
    %v621 = vadd.f32 %v611, %v617
    %v622 = vadd.f32 %v612, %v618
    %v623 = vadd.f32 %v613, %v619
    %v624 = vadd.f32 %v614, %v620
    %s625 = smul.f32 %s145, 0.33333334
    %v626 = vstv %s625
    %v627 = vmul.f32 %v626, %v100
    %v628 = vmul.f32 %v626, %v101
    %v629 = vmul.f32 %v626, %v102
    %v630 = vmul.f32 %v626, %v103
    %v631 = vadd.f32 %v621, %v627
    %v632 = vadd.f32 %v622, %v628
    %v633 = vadd.f32 %v623, %v629
    %v634 = vadd.f32 %v624, %v630
    %s635 = smul.f32 %s154, 0.33333334
    %v636 = vstv %s635
    %v637 = vmul.f32 %v636, %v213
    %v638 = vmul.f32 %v636, %v214
    %v639 = vmul.f32 %v636, %v215
    %v640 = vmul.f32 %v636, %v216
    %v641 = vadd.f32 %v631, %v637
    %v642 = vadd.f32 %v632, %v638
    %v643 = vadd.f32 %v633, %v639
    %v644 = vadd.f32 %v634, %v640
    %649 = vrot.lane.b32.xlu0 %v641, 127
    %v650 = vpop.permute.xlu0 %649
    %651 = vrot.lane.b32.xlu0 %v642, 127
    %v652 = vpop.permute.xlu0 %651
    %653 = vrot.lane.b32.xlu0 %v643, 127
    %v654 = vpop.permute.xlu0 %653
    %655 = vrot.lane.b32.xlu0 %v644, 127
    %v656 = vpop.permute.xlu0 %655
    %v661 = vsel %vm222, %v650, 0.0
    %v662 = vsel %vm222, %v652, 0.0
    %v663 = vsel %vm222, %v654, 0.0
    %v664 = vsel %vm222, %v656, 0.0
    %v665 = vadd.f32 %v588, %v661
    %v666 = vadd.f32 %v589, %v662
    %v667 = vadd.f32 %v590, %v663
    %v668 = vadd.f32 %v591, %v664
    %v669 = vstv %s110
    %v670 = vmul.f32 %v669, %v172
    %v671 = vmul.f32 %v669, %v173
    %v672 = vmul.f32 %v669, %v174
    %v673 = vmul.f32 %v669, %v175
    %v674 = vstv %s119
    %v675 = vmul.f32 %v674, %v96
    %v676 = vmul.f32 %v674, %v97
    %v677 = vmul.f32 %v674, %v98
    %v678 = vmul.f32 %v674, %v99
    %v679 = vadd.f32 %v670, %v675
    %v680 = vadd.f32 %v671, %v676
    %v681 = vadd.f32 %v672, %v677
    %v682 = vadd.f32 %v673, %v678
    %v683 = vstv %s128
    %v684 = vmul.f32 %v683, %v185
    %v685 = vmul.f32 %v683, %v186
    %v686 = vmul.f32 %v683, %v187
    %v687 = vmul.f32 %v683, %v188
    %v688 = vadd.f32 %v679, %v684
    %v689 = vadd.f32 %v680, %v685
    %v690 = vadd.f32 %v681, %v686
    %v691 = vadd.f32 %v682, %v687
    %s692 = smul.f32 %s137, 0.33333334
    %v693 = vstv %s692
    %v694 = vmul.f32 %v693, %v201
    %v695 = vmul.f32 %v693, %v202
    %v696 = vmul.f32 %v693, %v203
    %v697 = vmul.f32 %v693, %v204
    %v698 = vadd.f32 %v688, %v694
    %v699 = vadd.f32 %v689, %v695
    %v700 = vadd.f32 %v690, %v696
    %v701 = vadd.f32 %v691, %v697
    %s702 = smul.f32 %s146, 0.33333334
    %v703 = vstv %s702
    %v704 = vmul.f32 %v703, %v100
    %v705 = vmul.f32 %v703, %v101
    %v706 = vmul.f32 %v703, %v102
    %v707 = vmul.f32 %v703, %v103
    %v708 = vadd.f32 %v698, %v704
    %v709 = vadd.f32 %v699, %v705
    %v710 = vadd.f32 %v700, %v706
    %v711 = vadd.f32 %v701, %v707
    %s712 = smul.f32 %s155, 0.33333334
    %v713 = vstv %s712
    %v714 = vmul.f32 %v713, %v213
    %v715 = vmul.f32 %v713, %v214
    %v716 = vmul.f32 %v713, %v215
    %v717 = vmul.f32 %v713, %v216
    %v718 = vadd.f32 %v708, %v714
    %v719 = vadd.f32 %v709, %v715
    %v720 = vadd.f32 %v710, %v716
    %v721 = vadd.f32 %v711, %v717
    %726 = vrot.lane.b32.xlu0 %v718, 113
    %v727 = vpop.permute.xlu0 %726
    %728 = vrot.lane.b32.xlu0 %v719, 113
    %v729 = vpop.permute.xlu0 %728
    %730 = vrot.lane.b32.xlu0 %v720, 113
    %v731 = vpop.permute.xlu0 %730
    %732 = vrot.lane.b32.xlu0 %v721, 113
    %v733 = vpop.permute.xlu0 %732
    %vm738 = vmand %vm220, %vm223
    %v739 = vsel %vm738, %v727, 0.0
    %v740 = vsel %vm738, %v729, 0.0
    %v741 = vsel %vm738, %v731, 0.0
    %v742 = vsel %vm738, %v733, 0.0
    %v743 = vadd.f32 %v665, %v739
    %v744 = vadd.f32 %v666, %v740
    %v745 = vadd.f32 %v667, %v741
    %v746 = vadd.f32 %v668, %v742
    %v747 = vstv %s111
    %v748 = vmul.f32 %v747, %v172
    %v749 = vmul.f32 %v747, %v173
    %v750 = vmul.f32 %v747, %v174
    %v751 = vmul.f32 %v747, %v175
    %v752 = vstv %s120
    %v753 = vmul.f32 %v752, %v96
    %v754 = vmul.f32 %v752, %v97
    %v755 = vmul.f32 %v752, %v98
    %v756 = vmul.f32 %v752, %v99
    %v757 = vadd.f32 %v748, %v753
    %v758 = vadd.f32 %v749, %v754
    %v759 = vadd.f32 %v750, %v755
    %v760 = vadd.f32 %v751, %v756
    %v761 = vstv %s129
    %v762 = vmul.f32 %v761, %v185
    %v763 = vmul.f32 %v761, %v186
    %v764 = vmul.f32 %v761, %v187
    %v765 = vmul.f32 %v761, %v188
    %v766 = vadd.f32 %v757, %v762
    %v767 = vadd.f32 %v758, %v763
    %v768 = vadd.f32 %v759, %v764
    %v769 = vadd.f32 %v760, %v765
    %s770 = smul.f32 %s138, 0.33333334
    %v771 = vstv %s770
    %v772 = vmul.f32 %v771, %v201
    %v773 = vmul.f32 %v771, %v202
    %v774 = vmul.f32 %v771, %v203
    %v775 = vmul.f32 %v771, %v204
    %v776 = vadd.f32 %v766, %v772
    %v777 = vadd.f32 %v767, %v773
    %v778 = vadd.f32 %v768, %v774
    %v779 = vadd.f32 %v769, %v775
    %s780 = smul.f32 %s147, 0.33333334
    %v781 = vstv %s780
    %v782 = vmul.f32 %v781, %v100
    %v783 = vmul.f32 %v781, %v101
    %v784 = vmul.f32 %v781, %v102
    %v785 = vmul.f32 %v781, %v103
    %v786 = vadd.f32 %v776, %v782
    %v787 = vadd.f32 %v777, %v783
    %v788 = vadd.f32 %v778, %v784
    %v789 = vadd.f32 %v779, %v785
    %s790 = smul.f32 %s156, 0.33333334
    %v791 = vstv %s790
    %v792 = vmul.f32 %v791, %v213
    %v793 = vmul.f32 %v791, %v214
    %v794 = vmul.f32 %v791, %v215
    %v795 = vmul.f32 %v791, %v216
    %v796 = vadd.f32 %v786, %v792
    %v797 = vadd.f32 %v787, %v793
    %v798 = vadd.f32 %v788, %v794
    %v799 = vadd.f32 %v789, %v795
    %804 = vrot.lane.b32.xlu0 %v796, 112
    %v805 = vpop.permute.xlu0 %804
    %806 = vrot.lane.b32.xlu0 %v797, 112
    %v807 = vpop.permute.xlu0 %806
    %808 = vrot.lane.b32.xlu0 %v798, 112
    %v809 = vpop.permute.xlu0 %808
    %810 = vrot.lane.b32.xlu0 %v799, 112
    %v811 = vpop.permute.xlu0 %810
    %v816 = vsel %vm220, %v805, 0.0
    %v817 = vsel %vm220, %v807, 0.0
    %v818 = vsel %vm220, %v809, 0.0
    %v819 = vsel %vm220, %v811, 0.0
    %v820 = vadd.f32 %v743, %v816
    %v821 = vadd.f32 %v744, %v817
    %v822 = vadd.f32 %v745, %v818
    %v823 = vadd.f32 %v746, %v819
    %v824 = vstv %s112
    %v825 = vmul.f32 %v824, %v172
    %v826 = vmul.f32 %v824, %v173
    %v827 = vmul.f32 %v824, %v174
    %v828 = vmul.f32 %v824, %v175
    %v829 = vstv %s121
    %v830 = vmul.f32 %v829, %v96
    %v831 = vmul.f32 %v829, %v97
    %v832 = vmul.f32 %v829, %v98
    %v833 = vmul.f32 %v829, %v99
    %v834 = vadd.f32 %v825, %v830
    %v835 = vadd.f32 %v826, %v831
    %v836 = vadd.f32 %v827, %v832
    %v837 = vadd.f32 %v828, %v833
    %v838 = vstv %s130
    %v839 = vmul.f32 %v838, %v185
    %v840 = vmul.f32 %v838, %v186
    %v841 = vmul.f32 %v838, %v187
    %v842 = vmul.f32 %v838, %v188
    %v843 = vadd.f32 %v834, %v839
    %v844 = vadd.f32 %v835, %v840
    %v845 = vadd.f32 %v836, %v841
    %v846 = vadd.f32 %v837, %v842
    %s847 = smul.f32 %s139, 0.33333334
    %v848 = vstv %s847
    %v849 = vmul.f32 %v848, %v201
    %v850 = vmul.f32 %v848, %v202
    %v851 = vmul.f32 %v848, %v203
    %v852 = vmul.f32 %v848, %v204
    %v853 = vadd.f32 %v843, %v849
    %v854 = vadd.f32 %v844, %v850
    %v855 = vadd.f32 %v845, %v851
    %v856 = vadd.f32 %v846, %v852
    %s857 = smul.f32 %s148, 0.33333334
    %v858 = vstv %s857
    %v859 = vmul.f32 %v858, %v100
    %v860 = vmul.f32 %v858, %v101
    %v861 = vmul.f32 %v858, %v102
    %v862 = vmul.f32 %v858, %v103
    %v863 = vadd.f32 %v853, %v859
    %v864 = vadd.f32 %v854, %v860
    %v865 = vadd.f32 %v855, %v861
    %v866 = vadd.f32 %v856, %v862
    %s867 = smul.f32 %s157, 0.33333334
    %v868 = vstv %s867
    %v869 = vmul.f32 %v868, %v213
    %v870 = vmul.f32 %v868, %v214
    %v871 = vmul.f32 %v868, %v215
    %v872 = vmul.f32 %v868, %v216
    %v873 = vadd.f32 %v863, %v869
    %v874 = vadd.f32 %v864, %v870
    %v875 = vadd.f32 %v865, %v871
    %v876 = vadd.f32 %v866, %v872
    %881 = vrot.lane.b32.xlu0 %v873, 111
    %v882 = vpop.permute.xlu0 %881
    %883 = vrot.lane.b32.xlu0 %v874, 111
    %v884 = vpop.permute.xlu0 %883
    %885 = vrot.lane.b32.xlu0 %v875, 111
    %v886 = vpop.permute.xlu0 %885
    %887 = vrot.lane.b32.xlu0 %v876, 111
    %v888 = vpop.permute.xlu0 %887
    %vm893 = vmand %vm220, %vm222
    %v894 = vsel %vm893, %v882, 0.0
    %v895 = vsel %vm893, %v884, 0.0
    %v896 = vsel %vm893, %v886, 0.0
    %v897 = vsel %vm893, %v888, 0.0
    %v898 = vadd.f32 %v820, %v894
    %v899 = vadd.f32 %v821, %v895
    %v900 = vadd.f32 %v822, %v896
    %v901 = vadd.f32 %v823, %v897
    %v902 = vmax.f32 %v898, 0.0
    %v903 = vmax.f32 %v899, 0.0
    %v904 = vmax.f32 %v900, 0.0
    %v905 = vmax.f32 %v901, 0.0
    %v906 = vadd.f32 %v902, %v76
    %v907 = vadd.f32 %v903, %v77
    %v908 = vadd.f32 %v904, %v78
    %v909 = vadd.f32 %v905, %v79
    %910 = vst [vmem:[#allocation11] sm:$0xff] %v906
    %911 = vst [vmem:[#allocation11 + $0x8] sm:$0xff] %v907
    %912 = vst [vmem:[#allocation11 + $0x10] sm:$0xff] %v908
    %913 = vst [vmem:[#allocation11 + $0x18] sm:$0xff] %v909
    // Predicated region
    $region38: #{tpu_custom_call.1} parent=1 // pred_check
      _
    $region39: #{tpu_custom_call.1} parent=1 // pred_check_branch
      %915 = sbr.rel (0) target = $region41
    $region40: #{tpu_custom_call.1} parent=1 // pred_region
      %s917 = ssub.s32 512, 512
      %918 = vsyncadd [#allocation5], %s917
      %s919 = sshll.u32 [#allocation11], 4
      %s920 = int_to_ptr.vmem [resolvable:$true] %s919
      %925 = dma.vmem_to_hbm [thread:$0]  %s920, 512, %s5, [#allocation5], 128, 128, 8
    $region41: #{tpu_custom_call.1} parent=1 // pred_fallthru
      _
    // Predicated region
    $region42: #{tpu_custom_call.1} parent=1 // pred_check
      _
    $region43: #{tpu_custom_call.1} parent=1 // pred_check_branch
      %927 = sbr.rel (0) target = $region45
    $region44: #{tpu_custom_call.1} parent=1 // pred_region
      %928 = dma.done [#allocation5], 512
    $region45: #{tpu_custom_call.1} parent=1 // pred_fallthru
      _
    %929 = vsyncpa [#allocation4], 1
    %930 = vsyncpa [#allocation8], 1
    %931 = vsyncpa [#allocation5], 1
    %932 = vsyncpa [#allocation6], 1

</llo_original>
